<compile_context>
chip_gen: v7x
topology: tpu7x:2x2x1
jax: 0.10.0
libtpu: 0.0.40
codegen_flags: <defaults>
</compile_context>

<pallas_src>
import functools

import jax
import jax.numpy as jnp
from jax.experimental import pallas as pl
from jax.experimental.pallas import tpu as pltpu


# ----------------------------------------------------------------------------
# Generation-aware budgets and tile pickers
# ----------------------------------------------------------------------------
def _round_up(x, m):
    return ((x + m - 1) // m) * m


def _vmem_budget_bytes():
    """Scoped-VMEM budget: 3/4 of physical VMEM (v5e/v6e: 128 MiB, v7x: 64 MiB)."""
    cap = 64 * 1024 * 1024
    try:
        info = pltpu.get_tpu_info()
        cap = int(getattr(info, "vmem_capacity_bytes", cap) or cap)
    except Exception:
        pass
    return (cap * 3) // 4


def _pick_tm(m, v, e, budget):
    """Largest row tile for kernel 1 whose double-buffered x/gi blocks + resident
    weights fit the VMEM budget (1024-row tiles on 128-MiB parts, smaller on v7x)."""
    resident = 2 * 4 * (v * e + 3 * e * e + 4 * e)           # weights/biases, worst-case 2 buffers
    m8 = _round_up(m, 8)
    for tm in (1024, 512, 256, 128, 64, 32, 16, 8):
        if tm > m8:
            continue
        per_step = 2 * 4 * (tm * v + 3 * tm * e)             # x block + gi block, double-buffered
        if resident + per_step <= budget:
            return tm
    return 8


def _pick_tb(b):
    """Batch tile for the recurrence: split when the batch is large enough to keep
    (8,128)-aligned tiles, so v7x's second TensorCore gets its own batch shard."""
    for parts in (4, 2):
        if b % parts == 0 and (b // parts) % 8 == 0:
            return b // parts
    return b


def _pick_t_chunk(s, tb, e, budget):
    """Largest timestep chunk that (a) divides S, (b) keeps the flat output block
    lane-aligned ((c*E) % 128 == 0, or c == S so the block equals the full dim), and
    (c) fits the budget with double-buffered gi/out blocks."""
    resident = 2 * 4 * (3 * e * e + 3 * e) + 4 * tb * e
    for c in range(min(s, 64), 0, -1):
        if s % c:
            continue
        if (c * e) % 128 and c != s:
            continue
        per_step = 2 * 4 * (3 * c * tb * e + c * tb * e)
        if resident + per_step <= budget:
            return c
    # Only reachable if no lane-aligned divisor fits the budget (pathological shapes):
    # whole sequence in one block (correct, just unpipelined).
    return s


# ----------------------------------------------------------------------------
# Kernel 1: fused embedding + input-gate projection (gate-split, time-major output)
#   gi[g] = (x @ W_embed^T + b_embed) @ W_ih_g^T + b_ih_g
# ----------------------------------------------------------------------------
def _proj_kernel(x_ref, w_e_t_ref, b_e_ref, w_ih_t_ref, b_ih_ref, gi_ref):
    # x: (TM, V); w_e_t: (V, E); b_e: (1, E); w_ih_t: (3, E, E); b_ih: (3, 1, E); gi: (3, TM, E)
    md = w_e_t_ref.dtype
    emb = (jnp.dot(x_ref[...].astype(md), w_e_t_ref[...],
                   preferred_element_type=jnp.float32) + b_e_ref[...])
    # TODO(synk): nn.Dropout(input_dropout_p) is identity in eval mode; training-mode stochastic
    # dropout (and the no-op GRU inter-layer dropout for num_layers=1) is omitted.
    emb = emb.astype(md)
    for g in range(3):
        gi_ref[g] = (jnp.dot(emb, w_ih_t_ref[g], preferred_element_type=jnp.float32)
                     + b_ih_ref[g])


def fused_input_projection(x_rows, w_e_t, b_e, w_ih_t, b_ih, *, vmem_limit):
    """x_rows: (M, V) time-major flattened rows -> gi: (3, M, E)."""
    m, v = x_rows.shape
    e = w_e_t.shape[1]
    tm = _pick_tm(m, v, e, vmem_limit)
    m_pad = _round_up(m, tm)
    if m_pad != m:                                   # hardened fallback: pad rows, not tm=M
        x_rows = jnp.pad(x_rows, ((0, m_pad - m), (0, 0)))

    gi = pl.pallas_call(
        _proj_kernel,
        out_shape=jax.ShapeDtypeStruct((3, m_pad, e), jnp.float32),
        grid_spec=pltpu.PrefetchScalarGridSpec(
            num_scalar_prefetch=0,
            grid=(m_pad // tm,),
            in_specs=[
                pl.BlockSpec((tm, v), lambda i: (i, 0)),
                pl.BlockSpec((v, e), lambda i: (0, 0)),
                pl.BlockSpec((1, e), lambda i: (0, 0)),
                pl.BlockSpec((3, e, e), lambda i: (0, 0, 0)),
                pl.BlockSpec((3, 1, e), lambda i: (0, 0, 0)),
            ],
            out_specs=pl.BlockSpec((3, tm, e), lambda i: (0, i, 0)),
        ),
        compiler_params=pltpu.CompilerParams(
            dimension_semantics=("parallel",),
            vmem_limit_bytes=vmem_limit),
    )(x_rows, w_e_t, b_e, w_ih_t, b_ih)
    return gi if m_pad == m else gi[:, :m, :]


# ----------------------------------------------------------------------------
# Kernel 2: GRU recurrence over precomputed, time-major input projections
# (PyTorch gate order r, z, n):
#   r = sigmoid(gi_r + W_hr h + b_hr)
#   z = sigmoid(gi_z + W_hz h + b_hz)
#   n = tanh  (gi_n + r * (W_hn h + b_hn))
#   h = (1 - z) * n + z * h
# ----------------------------------------------------------------------------
def _gru_kernel(gi_ref, w_hh_ref, b_hh_ref, out_ref, h_last_ref, h_scratch,
                *, t_chunk, e, fused):
    c = pl.program_id(1)

    @pl.when(c == 0)
    def _():
        # PyTorch nn.GRU default: zero initial hidden when none is provided.
        h_scratch[...] = jnp.zeros_like(h_scratch)

    md = w_hh_ref.dtype
    # Hoist weight/bias loads out of the timestep loop.
    if fused:
        w_cat = w_hh_ref[...]                                   # (E, 3E): one MXU push per step
        b_cat = b_hh_ref[...]                                   # (1, 3E)
    else:
        w_r, w_z, w_n = w_hh_ref[0], w_hh_ref[1], w_hh_ref[2]   # (E, E) each
        b_r, b_z, b_n = b_hh_ref[0], b_hh_ref[1], b_hh_ref[2]   # (1, E) each

    h = h_scratch[...]
    for j in range(t_chunk):        # static unroll; only h stays live across timesteps
        if fused:
            gh = jnp.dot(h.astype(md), w_cat, preferred_element_type=jnp.float32) + b_cat
            gh_r, gh_z, gh_n = gh[:, :e], gh[:, e:2 * e], gh[:, 2 * e:]   # 128-aligned slices
        else:
            hm = h.astype(md)
            gh_r = jnp.dot(hm, w_r, preferred_element_type=jnp.float32) + b_r
            gh_z = jnp.dot(hm, w_z, preferred_element_type=jnp.float32) + b_z
            gh_n = jnp.dot(hm, w_n, preferred_element_type=jnp.float32) + b_n
        r = jax.nn.sigmoid(gi_ref[0, j] + gh_r)     # gi_ref[g, j]: dense (TB, E) load, no strides
        z = jax.nn.sigmoid(gi_ref[1, j] + gh_z)
        n = jnp.tanh(gi_ref[2, j] + r * gh_n)
        h = (1.0 - z) * n + z * h
        # Immediate per-timestep store into the lane-dense output block (static offset).
        out_ref[:, j * e:(j + 1) * e] = h.astype(out_ref.dtype)

    h_scratch[...] = h

    @pl.when(c == pl.num_programs(1) - 1)
    def _():
        h_last_ref[...] = h.astype(h_last_ref.dtype)


def gru_recurrence(gi, w_hh_prep, b_hh_prep, *, fused, vmem_limit):
    # gi: (3, S, B, E) time-major precomputed input-gate projections (input bias included).
    _, s, b, e = gi.shape
    tb = _pick_tb(b)
    t_chunk = _pick_t_chunk(s, tb, e, vmem_limit)
    kernel = functools.partial(_gru_kernel, t_chunk=t_chunk, e=e, fused=fused)
    w_idx = lambda ib, c: (0,) * w_hh_prep.ndim
    b_idx = lambda ib, c: (0,) * b_hh_prep.ndim

    out_flat, h_last = pl.pallas_call(
        kernel,
        out_shape=(
            jax.ShapeDtypeStruct((b, s * e), jnp.float32),      # lane-dense, batch-first
            jax.ShapeDtypeStruct((b, e), jnp.float32),
        ),
        grid_spec=pltpu.PrefetchScalarGridSpec(
            num_scalar_prefetch=0,
            grid=(b // tb, s // t_chunk),                       # (parallel batch, sequential time)
            in_specs=[
                pl.BlockSpec((3, t_chunk, tb, e), lambda ib, c: (0, c, ib, 0)),
                pl.BlockSpec(w_hh_prep.shape, w_idx),
                pl.BlockSpec(b_hh_prep.shape, b_idx),
            ],
            out_specs=[
                pl.BlockSpec((tb, t_chunk * e), lambda ib, c: (ib, c)),
                pl.BlockSpec((tb, e), lambda ib, c: (ib, 0)),
            ],
            scratch_shapes=[pltpu.VMEM((tb, e), jnp.float32)],
        ),
        compiler_params=pltpu.CompilerParams(
            dimension_semantics=("parallel", "arbitrary"),
            vmem_limit_bytes=vmem_limit),
    )(gi, w_hh_prep, b_hh_prep)
    return out_flat, h_last


# ----------------------------------------------------------------------------
# One-time weight layout preparation (hoisted out of the forward call)
# ----------------------------------------------------------------------------
def prepare_encoder_params(params, matmul_dtype=jnp.float32):
    """Transposed embed / per-gate input weights; fused (E, 3E) recurrent weight when E
    is lane-aligned. matmul_dtype=jnp.bfloat16 enables bf16 MXU operands (f32 accum)."""
    e = params["embed_w"].shape[0]
    fused = (e % 128 == 0)
    prep = {
        "embed_size": e,
        "fused_hh": fused,
        "w_e_t": params["embed_w"].T.astype(matmul_dtype),                        # (V, E)
        "b_e": params["embed_b"].reshape(1, e).astype(jnp.float32),
        "w_ih_t": jnp.transpose(params["w_ih"].reshape(3, e, e), (0, 2, 1)).astype(matmul_dtype),
        "b_ih": params["b_ih"].reshape(3, 1, e).astype(jnp.float32),
    }
    if fused:
        prep["w_hh"] = params["w_hh"].T.astype(matmul_dtype)                      # (E, 3E) r|z|n
        prep["b_hh"] = params["b_hh"].reshape(1, 3 * e).astype(jnp.float32)
    else:
        prep["w_hh"] = jnp.transpose(params["w_hh"].reshape(3, e, e), (0, 2, 1)).astype(matmul_dtype)
        prep["b_hh"] = params["b_hh"].reshape(3, 1, e).astype(jnp.float32)
    return prep


# ----------------------------------------------------------------------------
# EncoderRNN forward
# ----------------------------------------------------------------------------
def encoder_rnn_forward(features, prep):
    """features: (batch, seq_len, video_size) -> (output (B,S,E), hidden (1,B,E))."""
    b, s, v = features.shape
    e = prep["embed_size"]
    vmem_limit = _vmem_budget_bytes()

    # Layout plumbing: time-major rows so the recurrence reads contiguous per-timestep slabs.
    x_tm = jnp.transpose(features, (1, 0, 2)).reshape(s * b, v)
    gi = fused_input_projection(x_tm, prep["w_e_t"], prep["b_e"],
                                prep["w_ih_t"], prep["b_ih"], vmem_limit=vmem_limit)
    gi = gi.reshape(3, s, b, e)                        # free row-major reshape

    out_flat, h_last = gru_recurrence(gi, prep["w_hh"], prep["b_hh"],
                                      fused=prep["fused_hh"], vmem_limit=vmem_limit)

    output = out_flat.reshape(b, s, e)                 # free reshape; batch-first as required
    hidden = h_last.reshape(1, b, e)                   # (num_layers * num_directions = 1, B, E)
    return output, hidden


# ----------------------------------------------------------------------------
# Pure-JAX reference (for a correctness sanity check)
# ----------------------------------------------------------------------------
def encoder_rnn_reference(features, params):
    b, s, v = features.shape
    e = params["embed_w"].shape[0]
    x = features.reshape(b * s, v) @ params["embed_w"].T + params["embed_b"]
    x = x.reshape(b, s, e)

    def step(h, x_t):
        gi = x_t @ params["w_ih"].T + params["b_ih"]
        gh = h @ params["w_hh"].T + params["b_hh"]
        gi_r, gi_z, gi_n = gi[:, :e], gi[:, e:2 * e], gi[:, 2 * e:]
        gh_r, gh_z, gh_n = gh[:, :e], gh[:, e:2 * e], gh[:, 2 * e:]
        r = jax.nn.sigmoid(gi_r + gh_r)
        z = jax.nn.sigmoid(gi_z + gh_z)
        n = jnp.tanh(gi_n + r * gh_n)
        h_new = (1.0 - z) * n + z * h
        return h_new, h_new

    h0 = jnp.zeros((b, e), jnp.float32)
    h_last, out_tbe = jax.lax.scan(step, h0, jnp.transpose(x, (1, 0, 2)))
    return jnp.transpose(out_tbe, (1, 0, 2)), h_last.reshape(1, b, e)


if __name__ == "__main__":
    # Small, module-consistent shapes.
    batch, seq_len, video_size, embed_size = 2, 8, 16, 32

    key = jax.random.PRNGKey(0)
    k_feat, k_ew, k_eb, k_wih, k_whh, k_bih, k_bhh = jax.random.split(key, 7)

    features = jax.random.normal(k_feat, (batch, seq_len, video_size), jnp.float32)

    params = {
        "embed_w": 0.1 * jax.random.normal(k_ew, (embed_size, video_size), jnp.float32),
        "embed_b": 0.1 * jax.random.normal(k_eb, (embed_size,), jnp.float32),
        "w_ih": 0.1 * jax.random.normal(k_wih, (3 * embed_size, embed_size), jnp.float32),
        "w_hh": 0.1 * jax.random.normal(k_whh, (3 * embed_size, embed_size), jnp.float32),
        "b_ih": 0.1 * jax.random.normal(k_bih, (3 * embed_size,), jnp.float32),
        "b_hh": 0.1 * jax.random.normal(k_bhh, (3 * embed_size,), jnp.float32),
    }

    prep = prepare_encoder_params(params)          # one-time weight layout prep (f32 numerics)

    output, hidden = encoder_rnn_forward(features, prep)
    output = jax.block_until_ready(output)
    hidden = jax.block_until_ready(hidden)

    assert output.shape == (batch, seq_len, embed_size)
    assert hidden.shape == (1, batch, embed_size)

    ref_out, ref_hid = encoder_rnn_reference(features, params)
    assert jnp.allclose(output, ref_out, atol=1e-5, rtol=1e-5)
    assert jnp.allclose(hidden, ref_hid, atol=1e-5, rtol=1e-5)

    print("KERNEL_OK")
</pallas_src>

<mosaic_0001>
module attributes {stable_mosaic.version = 11 : i64} {
  func.func @_proj_kernel(%arg0: i32, %arg1: memref<16x16xf32, #tpu.memory_space<vmem>>, %arg2: memref<16x32xf32, #tpu.memory_space<vmem>>, %arg3: memref<1x32xf32, #tpu.memory_space<vmem>>, %arg4: memref<3x32x32xf32, #tpu.memory_space<vmem>>, %arg5: memref<3x1x32xf32, #tpu.memory_space<vmem>>, %arg6: memref<3x16x32xf32, #tpu.memory_space<vmem>>) attributes {dimension_semantics = [#tpu.dimension_semantics<parallel>], iteration_bounds = array<i64: 1>, scalar_prefetch = 0 : i64, scratch_operands = 0 : i64, tpu.core_type = #tpu.core_type<tc>, window_params = [{transform_indices = @transform_0, window_bounds = array<i64: 16, 16>}, {pipeline_mode = #tpu.pipeline_mode<synchronous>, transform_indices = @transform_1, window_bounds = array<i64: 16, 32>}, {pipeline_mode = #tpu.pipeline_mode<synchronous>, transform_indices = @transform_2, window_bounds = array<i64: 1, 32>}, {pipeline_mode = #tpu.pipeline_mode<synchronous>, transform_indices = @transform_3, window_bounds = array<i64: 3, 32, 32>}, {pipeline_mode = #tpu.pipeline_mode<synchronous>, transform_indices = @transform_4, window_bounds = array<i64: 3, 1, 32>}, {transform_indices = @transform_5, window_bounds = array<i64: 3, 16, 32>}]} {
    %c0 = arith.constant 0 : index
    %c0_0 = arith.constant 0 : index
    %0 = vector.load %arg1[%c0, %c0_0] : memref<16x16xf32, #tpu.memory_space<vmem>>, vector<16x16xf32>
    %c0_1 = arith.constant 0 : index
    %c0_2 = arith.constant 0 : index
    %1 = vector.load %arg2[%c0_1, %c0_2] : memref<16x32xf32, #tpu.memory_space<vmem>>, vector<16x32xf32>
    %cst = arith.constant dense<0.000000e+00> : vector<16x32xf32>
    %2 = tpu.matmul %0, %1, %cst {dimension_numbers = #tpu.dot_dimension_numbers<[1], [0], [0], [1], [0, 0, 1, 1], [], []>} : vector<16x16xf32>, vector<16x32xf32>, vector<16x32xf32> -> vector<16x32xf32>
    %c0_3 = arith.constant 0 : index
    %c0_4 = arith.constant 0 : index
    %3 = vector.load %arg3[%c0_3, %c0_4] : memref<1x32xf32, #tpu.memory_space<vmem>>, vector<1x32xf32>
    %4 = vector.broadcast %3 : vector<1x32xf32> to vector<16x32xf32>
    %5 = arith.addf %2, %4 : vector<16x32xf32>
    %c0_5 = arith.constant 0 : index
    %c0_6 = arith.constant 0 : index
    %c0_7 = arith.constant 0 : index
    %6 = vector.load %arg4[%c0_5, %c0_6, %c0_7] : memref<3x32x32xf32, #tpu.memory_space<vmem>>, vector<1x32x32xf32>
    %7 = vector.shape_cast %6 : vector<1x32x32xf32> to vector<32x32xf32>
    %cst_8 = arith.constant dense<0.000000e+00> : vector<16x32xf32>
    %8 = tpu.matmul %5, %7, %cst_8 {dimension_numbers = #tpu.dot_dimension_numbers<[1], [0], [0], [1], [0, 0, 1, 1], [], []>} : vector<16x32xf32>, vector<32x32xf32>, vector<16x32xf32> -> vector<16x32xf32>
    %c0_9 = arith.constant 0 : index
    %c0_10 = arith.constant 0 : index
    %c0_11 = arith.constant 0 : index
    %9 = vector.load %arg5[%c0_9, %c0_10, %c0_11] : memref<3x1x32xf32, #tpu.memory_space<vmem>>, vector<1x1x32xf32>
    %10 = vector.shape_cast %9 : vector<1x1x32xf32> to vector<1x32xf32>
    %11 = vector.broadcast %10 : vector<1x32xf32> to vector<16x32xf32>
    %12 = arith.addf %8, %11 : vector<16x32xf32>
    %c0_12 = arith.constant 0 : index
    %c0_13 = arith.constant 0 : index
    %c0_14 = arith.constant 0 : index
    %13 = vector.load %arg6[%c0_12, %c0_13, %c0_14] : memref<3x16x32xf32, #tpu.memory_space<vmem>>, vector<1x16x32xf32>
    %14 = vector.shape_cast %13 : vector<1x16x32xf32> to vector<16x32xf32>
    %15 = vector.shape_cast %12 : vector<16x32xf32> to vector<1x16x32xf32>
    tpu.vector_store %arg6[%c0_12, %c0_13, %c0_14], %15 {strides = array<i32>} : memref<3x16x32xf32, #tpu.memory_space<vmem>>, vector<1x16x32xf32>,
    %c1 = arith.constant 1 : index
    %c0_15 = arith.constant 0 : index
    %c0_16 = arith.constant 0 : index
    %16 = vector.load %arg4[%c1, %c0_15, %c0_16] : memref<3x32x32xf32, #tpu.memory_space<vmem>>, vector<1x32x32xf32>
    %17 = vector.shape_cast %16 : vector<1x32x32xf32> to vector<32x32xf32>
    %cst_17 = arith.constant dense<0.000000e+00> : vector<16x32xf32>
    %18 = tpu.matmul %5, %17, %cst_17 {dimension_numbers = #tpu.dot_dimension_numbers<[1], [0], [0], [1], [0, 0, 1, 1], [], []>} : vector<16x32xf32>, vector<32x32xf32>, vector<16x32xf32> -> vector<16x32xf32>
    %c1_18 = arith.constant 1 : index
    %c0_19 = arith.constant 0 : index
    %c0_20 = arith.constant 0 : index
    %19 = vector.load %arg5[%c1_18, %c0_19, %c0_20] : memref<3x1x32xf32, #tpu.memory_space<vmem>>, vector<1x1x32xf32>
    %20 = vector.shape_cast %19 : vector<1x1x32xf32> to vector<1x32xf32>
    %21 = vector.broadcast %20 : vector<1x32xf32> to vector<16x32xf32>
    %22 = arith.addf %18, %21 : vector<16x32xf32>
    %c1_21 = arith.constant 1 : index
    %c0_22 = arith.constant 0 : index
    %c0_23 = arith.constant 0 : index
    %23 = vector.load %arg6[%c1_21, %c0_22, %c0_23] : memref<3x16x32xf32, #tpu.memory_space<vmem>>, vector<1x16x32xf32>
    %24 = vector.shape_cast %23 : vector<1x16x32xf32> to vector<16x32xf32>
    %25 = vector.shape_cast %22 : vector<16x32xf32> to vector<1x16x32xf32>
    tpu.vector_store %arg6[%c1_21, %c0_22, %c0_23], %25 {strides = array<i32>} : memref<3x16x32xf32, #tpu.memory_space<vmem>>, vector<1x16x32xf32>,
    %c2 = arith.constant 2 : index
    %c0_24 = arith.constant 0 : index
    %c0_25 = arith.constant 0 : index
    %26 = vector.load %arg4[%c2, %c0_24, %c0_25] : memref<3x32x32xf32, #tpu.memory_space<vmem>>, vector<1x32x32xf32>
    %27 = vector.shape_cast %26 : vector<1x32x32xf32> to vector<32x32xf32>
    %cst_26 = arith.constant dense<0.000000e+00> : vector<16x32xf32>
    %28 = tpu.matmul %5, %27, %cst_26 {dimension_numbers = #tpu.dot_dimension_numbers<[1], [0], [0], [1], [0, 0, 1, 1], [], []>} : vector<16x32xf32>, vector<32x32xf32>, vector<16x32xf32> -> vector<16x32xf32>
    %c2_27 = arith.constant 2 : index
    %c0_28 = arith.constant 0 : index
    %c0_29 = arith.constant 0 : index
    %29 = vector.load %arg5[%c2_27, %c0_28, %c0_29] : memref<3x1x32xf32, #tpu.memory_space<vmem>>, vector<1x1x32xf32>
    %30 = vector.shape_cast %29 : vector<1x1x32xf32> to vector<1x32xf32>
    %31 = vector.broadcast %30 : vector<1x32xf32> to vector<16x32xf32>
    %32 = arith.addf %28, %31 : vector<16x32xf32>
    %c2_30 = arith.constant 2 : index
    %c0_31 = arith.constant 0 : index
    %c0_32 = arith.constant 0 : index
    %33 = vector.load %arg6[%c2_30, %c0_31, %c0_32] : memref<3x16x32xf32, #tpu.memory_space<vmem>>, vector<1x16x32xf32>
    %34 = vector.shape_cast %33 : vector<1x16x32xf32> to vector<16x32xf32>
    %35 = vector.shape_cast %32 : vector<16x32xf32> to vector<1x16x32xf32>
    tpu.vector_store %arg6[%c2_30, %c0_31, %c0_32], %35 {strides = array<i32>} : memref<3x16x32xf32, #tpu.memory_space<vmem>>, vector<1x16x32xf32>,
    return
  }
  func.func @transform_0(%arg0: i32) -> (i32, i32) {
    %c0_i32 = arith.constant 0 : i32
    %c0_i32_0 = arith.constant 0 : i32
    return %arg0, %c0_i32 : i32, i32
  }
  func.func @transform_1(%arg0: i32) -> (i32, i32) {
    %c0_i32 = arith.constant 0 : i32
    %c0_i32_0 = arith.constant 0 : i32
    %c0_i32_1 = arith.constant 0 : i32
    return %c0_i32, %c0_i32_0 : i32, i32
  }
  func.func @transform_2(%arg0: i32) -> (i32, i32) {
    %c0_i32 = arith.constant 0 : i32
    %c0_i32_0 = arith.constant 0 : i32
    %c0_i32_1 = arith.constant 0 : i32
    return %c0_i32, %c0_i32_0 : i32, i32
  }
  func.func @transform_3(%arg0: i32) -> (i32, i32, i32) {
    %c0_i32 = arith.constant 0 : i32
    %c0_i32_0 = arith.constant 0 : i32
    %c0_i32_1 = arith.constant 0 : i32
    %c0_i32_2 = arith.constant 0 : i32
    return %c0_i32, %c0_i32_0, %c0_i32_1 : i32, i32, i32
  }
  func.func @transform_4(%arg0: i32) -> (i32, i32, i32) {
    %c0_i32 = arith.constant 0 : i32
    %c0_i32_0 = arith.constant 0 : i32
    %c0_i32_1 = arith.constant 0 : i32
    %c0_i32_2 = arith.constant 0 : i32
    return %c0_i32, %c0_i32_0, %c0_i32_1 : i32, i32, i32
  }
  func.func @transform_5(%arg0: i32) -> (i32, i32, i32) {
    %c0_i32 = arith.constant 0 : i32
    %c0_i32_0 = arith.constant 0 : i32
    %c0_i32_1 = arith.constant 0 : i32
    return %c0_i32, %arg0, %c0_i32_0 : i32, i32, i32
  }
}

</mosaic_0001>

<llo_original>
// kernel: tpu_custom_call.1
$region0: #{tpu_custom_call.1}
  #allocation0 [shape = 'u32[]', space=smem, size = 0x4, offset = 0x4, fixed_abs, tag = 'smem constant byte address 0x4 - core index']
  #allocation1 [shape = 'u32[144,128]{1,0:T(1,128)}', space=vmem, size = 0x12000, scoped, tag = 'internal scratch']
  %s0 = inlined_call_operand.hbm [shape: f32[16,16], index: 0, kind: input, shape index: {}]
  %s1 = inlined_call_operand.hbm [shape: f32[16,32], index: 1, kind: input, shape index: {}]
  %s2 = inlined_call_operand.vmem [shape: f32[1,32], index: 2, kind: input, shape index: {}]
  %s3 = inlined_call_operand.hbm [shape: f32[3,32,32], index: 3, kind: input, shape index: {}]
  %s4 = inlined_call_operand.vmem [shape: f32[3,1,32], index: 4, kind: input, shape index: {}]
  %s5 = inlined_call_operand.hbm [shape: f32[3,16,32], index: 5, kind: output, shape index: {}]
  %s6 = sld [smem:[#allocation0]]
  $region42: #{tpu_custom_call.1} parent=0
    _
  %s8 = ssub.s32 1, %s6
  %s9 = scalar_select 0, %s8, %s6
  $region1: #{tpu_custom_call.1} parent=0
    #allocation2 [shape = 'u8[8192]{0}', space=vmem, size = 0x2000, scoped, tag = 'input window, operand 0, single buffered']
    #allocation3 [shape = 's32[1]{0}', space=sflag, size = 0x4, scoped, tag = 'scoped memory for tpu_custom_call.1']
    #allocation4 [shape = 's32[1]{0}', space=sflag, size = 0x4, scoped, tag = 'scoped memory for tpu_custom_call.1']
    #allocation5 [shape = 'u8[8192]{0}', space=vmem, size = 0x2000, scoped, tag = 'input window, operand 1, single buffered']
    #allocation6 [shape = 's32[1]{0}', space=sflag, size = 0x4, scoped, tag = 'scoped memory for tpu_custom_call.1']
    #allocation7 [shape = 'u8[49152]{0}', space=vmem, size = 0xc000, scoped, tag = 'input window, operand 3, single buffered']
    #allocation8 [shape = 'u8[24576]{0}', space=vmem, size = 0x6000, scoped, tag = 'output window, operand 0, single buffered']
    %10 = vsyncpa [#allocation3], 0
    %11 = vsyncpa [#allocation6], 0
    %12 = vsyncpa [#allocation4], 0
    // Predicated region
    $region2: #{tpu_custom_call.1} parent=1 // pred_check
      _
    $region3: #{tpu_custom_call.1} parent=1 // pred_check_branch
      %14 = sbr.rel (0) target = $region5
    $region4: #{tpu_custom_call.1} parent=1 // pred_region
      %s16 = ssub.s32 256, 256
      %17 = vsyncadd [#allocation3], %s16
      %s18 = sshll.u32 [#allocation2], 4
      %s19 = int_to_ptr.vmem [resolvable:$true] %s18
      %24 = dma.hbm_to_vmem [thread:$0]  %s0, 256, %s19, [#allocation3], 128, 128, 8
    $region5: #{tpu_custom_call.1} parent=1 // pred_fallthru
      _
    // Predicated region
    $region6: #{tpu_custom_call.1} parent=1 // pred_check
      _
    $region7: #{tpu_custom_call.1} parent=1 // pred_check_branch
      %26 = sbr.rel (0) target = $region9
    $region8: #{tpu_custom_call.1} parent=1 // pred_region
      %s28 = ssub.s32 256, 256
      %29 = vsyncadd [#allocation6], %s28
      %s30 = sshll.u32 [#allocation5], 4
      %s31 = int_to_ptr.vmem [resolvable:$true] %s30
      %36 = dma.hbm_to_vmem [thread:$0]  %s1, 256, %s31, [#allocation6], 128, 128, 8
    $region9: #{tpu_custom_call.1} parent=1 // pred_fallthru
      _
    // Predicated region
    $region10: #{tpu_custom_call.1} parent=1 // pred_check
      _
    $region11: #{tpu_custom_call.1} parent=1 // pred_check_branch
      %38 = sbr.rel (0) target = $region13
    $region12: #{tpu_custom_call.1} parent=1 // pred_region
      _
    $region13: #{tpu_custom_call.1} parent=1 // pred_fallthru
      _
    // Predicated region
    $region14: #{tpu_custom_call.1} parent=1 // pred_check
      _
    $region15: #{tpu_custom_call.1} parent=1 // pred_check_branch
      %40 = sbr.rel (0) target = $region17
    $region16: #{tpu_custom_call.1} parent=1 // pred_region
      %s42 = ssub.s32 1536, 1536
      %43 = vsyncadd [#allocation6], %s42
      %s44 = sshll.u32 [#allocation7], 4
      %s45 = int_to_ptr.vmem [resolvable:$true] %s44
      %50 = dma.hbm_to_vmem [thread:$0]  %s3, 1536, %s45, [#allocation6], 128, 128, 8
    $region17: #{tpu_custom_call.1} parent=1 // pred_fallthru
      _
    // Predicated region
    $region18: #{tpu_custom_call.1} parent=1 // pred_check
      _
    $region19: #{tpu_custom_call.1} parent=1 // pred_check_branch
      %52 = sbr.rel (0) target = $region21
    $region20: #{tpu_custom_call.1} parent=1 // pred_region
      _
    $region21: #{tpu_custom_call.1} parent=1 // pred_fallthru
      _
    // Predicated region
    $region22: #{tpu_custom_call.1} parent=1 // pred_check
      _
    $region23: #{tpu_custom_call.1} parent=1 // pred_check_branch
      %54 = sbr.rel (0) target = $region25
    $region24: #{tpu_custom_call.1} parent=1 // pred_region
      %55 = dma.done [#allocation3], 256
    $region25: #{tpu_custom_call.1} parent=1 // pred_fallthru
      _
    // Predicated region
    $region26: #{tpu_custom_call.1} parent=1 // pred_check
      _
    $region27: #{tpu_custom_call.1} parent=1 // pred_check_branch
      %57 = sbr.rel (0) target = $region29
    $region28: #{tpu_custom_call.1} parent=1 // pred_region
      %58 = dma.done [#allocation6], 256
    $region29: #{tpu_custom_call.1} parent=1 // pred_fallthru
      _
    // Predicated region
    $region30: #{tpu_custom_call.1} parent=1 // pred_check
      _
    $region31: #{tpu_custom_call.1} parent=1 // pred_check_branch
      %60 = sbr.rel (0) target = $region33
    $region32: #{tpu_custom_call.1} parent=1 // pred_region
      %61 = dma.done [#allocation6], 1536
    $region33: #{tpu_custom_call.1} parent=1 // pred_fallthru
      _
    %v62 = vld [vmem:[#allocation2] sm:$0xff]
    %v63 = vld [vmem:[#allocation2 + $0x8] sm:$0xff]
    %v64 = vld [vmem:[#allocation5] sm:$0xff]
    %v65 = vld [vmem:[#allocation5 + $0x8] sm:$0xff]
    %v66 = vld [vmem:[%s2] sm:$0x1]
    %v68 = vlaneseq
    %v69 = vshrl.u32 %v68, 7
    %v70 = vsub.s32 0, %v69
    %v71 = vrot.slane %v66, %v70
    %vm73 = vcmask 130048
    %v75 = vsel %vm73, %v62, 0
    %v78 = vsel %vm73, %v63, 0
    %80 = vmatprep.subr.mxu0 0.0
    %81 = vmatpush1.msra.mxu0 %v64
    %82 = vmatprep.subr.mxu0 0.0
    %83 = vmatpush1.msra.mxu0 %v65
    %84 = vmatprep.subr.mxu0 0.0
    %85 = vmatpush1.msra.mxu0 0.0
    %86 = vmatprep.subr.mxu0 0.0
    %87 = vmatpush1.msra.mxu0 0.0
    %88 = vmatprep.subr.mxu0 0.0
    %89 = vmatpush1.msra.mxu0 0.0
    %90 = vmatprep.subr.mxu0 0.0
    %91 = vmatpush1.msra.mxu0 0.0
    %92 = vmatprep.subr.mxu0 0.0
    %93 = vmatpush1.msra.mxu0 0.0
    %94 = vmatprep.subr.mxu0 0.0
    %95 = vmatpush1.msra.mxu0 0.0
    %96 = vmatprep.subr.mxu0 0.0
    %97 = vmatpush1.msra.mxu0 0.0
    %98 = vmatprep.subr.mxu0 0.0
    %99 = vmatpush1.msra.mxu0 0.0
    %100 = vmatprep.subr.mxu0 0.0
    %101 = vmatpush1.msra.mxu0 0.0
    %102 = vmatprep.subr.mxu0 0.0
    %103 = vmatpush1.msra.mxu0 0.0
    %104 = vmatprep.subr.mxu0 0.0
    %105 = vmatpush1.msra.mxu0 0.0
    %106 = vmatprep.subr.mxu0 0.0
    %107 = vmatpush1.msra.mxu0 0.0
    %108 = vmatprep.subr.mxu0 0.0
    %109 = vmatpush1.msra.mxu0 0.0
    %110 = vmatprep.subr.mxu0 0.0
    %111 = vmatpush1.msra.mxu0 0.0
    %112 = vmatprep.subr.mxu0 0.0
    %113 = vmatpush1.msra.mxu0 0.0
    %114 = vmatprep.subr.mxu0 0.0
    %115 = vmatpush1.msra.mxu0 0.0
    %116 = vmatprep.subr.mxu0 0.0
    %117 = vmatpush1.msra.mxu0 0.0
    %118 = vmatprep.subr.mxu0 0.0
    %119 = vmatpush1.msra.mxu0 0.0
    %120 = vmatprep.subr.mxu0 0.0
    %121 = vmatpush1.msra.mxu0 0.0
    %122 = vmatprep.subr.mxu0 0.0
    %123 = vmatpush1.msra.mxu0 0.0
    %124 = vmatprep.subr.mxu0 0.0
    %125 = vmatpush1.msra.mxu0 0.0
    %126 = vmatprep.subr.mxu0 0.0
    %127 = vmatpush1.msra.mxu0 0.0
    %128 = vmatprep.subr.mxu0 0.0
    %129 = vmatpush1.msra.mxu0 0.0
    %130 = vmatprep.subr.mxu0 0.0
    %131 = vmatpush1.msra.mxu0 0.0
    %132 = vmatprep.subr.mxu0 0.0
    %133 = vmatpush1.msra.mxu0 0.0
    %134 = vmatprep.subr.mxu0 0.0
    %135 = vmatpush1.msra.mxu0 0.0
    %136 = vmatprep.subr.mxu0 0.0
    %137 = vmatpush1.msra.mxu0 0.0
    %138 = vmatprep.subr.mxu0 0.0
    %139 = vmatpush1.msra.mxu0 0.0
    %140 = vmatprep.subr.mxu0 0.0
    %141 = vmatpush1.msra.mxu0 0.0
    %142 = vmatprep.subr.mxu0 0.0
    %143 = vmatpush1.msra.mxu0 0.0
    %144 = vmatprep.mubr.f32.mxu0 0.0
    %145 = vmatmul.mubr.f32.gmra.mrb[0].mxu0 %v75
    %v146 = vpop.f32.mrb[0].mxu0
    %v147 = vadd.f32 %v71, %v146
    %v148 = vpop.f32.mrb[0].mxu0
    %149 = vmatprep.mubr.f32.mxu0 0.0
    %150 = vmatmul.mubr.f32.gmra.mrb[0].mxu0 %v78
    %v151 = vpop.f32.mrb[0].mxu0
    %v152 = vadd.f32 %v71, %v151
    %v153 = vpop.f32.mrb[0].mxu0
    %154 = vdwg.mxu0
    %v155 = vld [vmem:[#allocation7] sm:$0xff]
    %v156 = vld [vmem:[#allocation7 + $0x8] sm:$0xff]
    %v157 = vld [vmem:[#allocation7 + $0x10] sm:$0xff]
    %v158 = vld [vmem:[#allocation7 + $0x18] sm:$0xff]
    %v159 = vld [vmem:[%s4] sm:$0x1]
    %v161 = vlaneseq
    %v162 = vshrl.u32 %v161, 7
    %v163 = vsub.s32 0, %v162
    %v164 = vrot.slane %v159, %v163
    %vm166 = vcmask 261120
    %v168 = vsel %vm166, %v147, 0
    %v171 = vsel %vm166, %v152, 0
    %173 = vmatprep.subr.mxu0 0.0
    %174 = vmatpush1.msra.mxu0 %v155
    %175 = vmatprep.subr.mxu0 0.0
    %176 = vmatpush1.msra.mxu0 %v156
    %177 = vmatprep.subr.mxu0 0.0
    %178 = vmatpush1.msra.mxu0 %v157
    %179 = vmatprep.subr.mxu0 0.0
    %180 = vmatpush1.msra.mxu0 %v158
    %181 = vmatprep.subr.mxu0 0.0
    %182 = vmatpush1.msra.mxu0 0.0
    %183 = vmatprep.subr.mxu0 0.0
    %184 = vmatpush1.msra.mxu0 0.0
    %185 = vmatprep.subr.mxu0 0.0
    %186 = vmatpush1.msra.mxu0 0.0
    %187 = vmatprep.subr.mxu0 0.0
    %188 = vmatpush1.msra.mxu0 0.0
    %189 = vmatprep.subr.mxu0 0.0
    %190 = vmatpush1.msra.mxu0 0.0
    %191 = vmatprep.subr.mxu0 0.0
    %192 = vmatpush1.msra.mxu0 0.0
    %193 = vmatprep.subr.mxu0 0.0
    %194 = vmatpush1.msra.mxu0 0.0
    %195 = vmatprep.subr.mxu0 0.0
    %196 = vmatpush1.msra.mxu0 0.0
    %197 = vmatprep.subr.mxu0 0.0
    %198 = vmatpush1.msra.mxu0 0.0
    %199 = vmatprep.subr.mxu0 0.0
    %200 = vmatpush1.msra.mxu0 0.0
    %201 = vmatprep.subr.mxu0 0.0
    %202 = vmatpush1.msra.mxu0 0.0
    %203 = vmatprep.subr.mxu0 0.0
    %204 = vmatpush1.msra.mxu0 0.0
    %205 = vmatprep.subr.mxu0 0.0
    %206 = vmatpush1.msra.mxu0 0.0
    %207 = vmatprep.subr.mxu0 0.0
    %208 = vmatpush1.msra.mxu0 0.0
    %209 = vmatprep.subr.mxu0 0.0
    %210 = vmatpush1.msra.mxu0 0.0
    %211 = vmatprep.subr.mxu0 0.0
    %212 = vmatpush1.msra.mxu0 0.0
    %213 = vmatprep.subr.mxu0 0.0
    %214 = vmatpush1.msra.mxu0 0.0
    %215 = vmatprep.subr.mxu0 0.0
    %216 = vmatpush1.msra.mxu0 0.0
    %217 = vmatprep.subr.mxu0 0.0
    %218 = vmatpush1.msra.mxu0 0.0
    %219 = vmatprep.subr.mxu0 0.0
    %220 = vmatpush1.msra.mxu0 0.0
    %221 = vmatprep.subr.mxu0 0.0
    %222 = vmatpush1.msra.mxu0 0.0
    %223 = vmatprep.subr.mxu0 0.0
    %224 = vmatpush1.msra.mxu0 0.0
    %225 = vmatprep.subr.mxu0 0.0
    %226 = vmatpush1.msra.mxu0 0.0
    %227 = vmatprep.subr.mxu0 0.0
    %228 = vmatpush1.msra.mxu0 0.0
    %229 = vmatprep.subr.mxu0 0.0
    %230 = vmatpush1.msra.mxu0 0.0
    %231 = vmatprep.subr.mxu0 0.0
    %232 = vmatpush1.msra.mxu0 0.0
    %233 = vmatprep.subr.mxu0 0.0
    %234 = vmatpush1.msra.mxu0 0.0
    %235 = vmatprep.subr.mxu0 0.0
    %236 = vmatpush1.msra.mxu0 0.0
    %237 = vmatprep.mubr.f32.mxu0 0.0
    %238 = vmatmul.mubr.f32.gmra.mrb[0].mxu0 %v168
    %v239 = vpop.f32.mrb[0].mxu0
    %v240 = vadd.f32 %v164, %v239
    %v241 = vpop.f32.mrb[0].mxu0
    %242 = vmatprep.mubr.f32.mxu0 0.0
    %243 = vmatmul.mubr.f32.gmra.mrb[0].mxu0 %v171
    %v244 = vpop.f32.mrb[0].mxu0
    %v245 = vadd.f32 %v164, %v244
    %v246 = vpop.f32.mrb[0].mxu0
    %247 = vdwg.mxu0
    %248 = vst.msk [vmem:[#allocation8] sm:$0xff] %vm166, %v240
    %249 = vst.msk [vmem:[#allocation8 + $0x8] sm:$0xff] %vm166, %v245
    %s250 = scalar_lea.vmem [#allocation7], 32
    %v251 = vld [vmem:[%s250] sm:$0xff]
    %v252 = vld [vmem:[%s250 + $0x8] sm:$0xff]
    %v253 = vld [vmem:[%s250 + $0x10] sm:$0xff]
    %v254 = vld [vmem:[%s250 + $0x18] sm:$0xff]
    %s255 = scalar_lea.vmem %s4, 1
    %v256 = vld [vmem:[%s255] sm:$0x1]
    %v258 = vlaneseq
    %v259 = vshrl.u32 %v258, 7
    %v260 = vsub.s32 0, %v259
    %v261 = vrot.slane %v256, %v260
    %263 = vmatprep.subr.mxu0 0.0
    %264 = vmatpush1.msra.mxu0 %v251
    %265 = vmatprep.subr.mxu0 0.0
    %266 = vmatpush1.msra.mxu0 %v252
    %267 = vmatprep.subr.mxu0 0.0
    %268 = vmatpush1.msra.mxu0 %v253
    %269 = vmatprep.subr.mxu0 0.0
    %270 = vmatpush1.msra.mxu0 %v254
    %271 = vmatprep.subr.mxu0 0.0
    %272 = vmatpush1.msra.mxu0 0.0
    %273 = vmatprep.subr.mxu0 0.0
    %274 = vmatpush1.msra.mxu0 0.0
    %275 = vmatprep.subr.mxu0 0.0
    %276 = vmatpush1.msra.mxu0 0.0
    %277 = vmatprep.subr.mxu0 0.0
    %278 = vmatpush1.msra.mxu0 0.0
    %279 = vmatprep.subr.mxu0 0.0
    %280 = vmatpush1.msra.mxu0 0.0
    %281 = vmatprep.subr.mxu0 0.0
    %282 = vmatpush1.msra.mxu0 0.0
    %283 = vmatprep.subr.mxu0 0.0
    %284 = vmatpush1.msra.mxu0 0.0
    %285 = vmatprep.subr.mxu0 0.0
    %286 = vmatpush1.msra.mxu0 0.0
    %287 = vmatprep.subr.mxu0 0.0
    %288 = vmatpush1.msra.mxu0 0.0
    %289 = vmatprep.subr.mxu0 0.0
    %290 = vmatpush1.msra.mxu0 0.0
    %291 = vmatprep.subr.mxu0 0.0
    %292 = vmatpush1.msra.mxu0 0.0
    %293 = vmatprep.subr.mxu0 0.0
    %294 = vmatpush1.msra.mxu0 0.0
    %295 = vmatprep.subr.mxu0 0.0
    %296 = vmatpush1.msra.mxu0 0.0
    %297 = vmatprep.subr.mxu0 0.0
    %298 = vmatpush1.msra.mxu0 0.0
    %299 = vmatprep.subr.mxu0 0.0
    %300 = vmatpush1.msra.mxu0 0.0
    %301 = vmatprep.subr.mxu0 0.0
    %302 = vmatpush1.msra.mxu0 0.0
    %303 = vmatprep.subr.mxu0 0.0
    %304 = vmatpush1.msra.mxu0 0.0
    %305 = vmatprep.subr.mxu0 0.0
    %306 = vmatpush1.msra.mxu0 0.0
    %307 = vmatprep.subr.mxu0 0.0
    %308 = vmatpush1.msra.mxu0 0.0
    %309 = vmatprep.subr.mxu0 0.0
    %310 = vmatpush1.msra.mxu0 0.0
    %311 = vmatprep.subr.mxu0 0.0
    %312 = vmatpush1.msra.mxu0 0.0
    %313 = vmatprep.subr.mxu0 0.0
    %314 = vmatpush1.msra.mxu0 0.0
    %315 = vmatprep.subr.mxu0 0.0
    %316 = vmatpush1.msra.mxu0 0.0
    %317 = vmatprep.subr.mxu0 0.0
    %318 = vmatpush1.msra.mxu0 0.0
    %319 = vmatprep.subr.mxu0 0.0
    %320 = vmatpush1.msra.mxu0 0.0
    %321 = vmatprep.subr.mxu0 0.0
    %322 = vmatpush1.msra.mxu0 0.0
    %323 = vmatprep.subr.mxu0 0.0
    %324 = vmatpush1.msra.mxu0 0.0
    %325 = vmatprep.subr.mxu0 0.0
    %326 = vmatpush1.msra.mxu0 0.0
    %327 = vmatprep.mubr.f32.mxu0 0.0
    %328 = vmatmul.mubr.f32.gmra.mrb[0].mxu0 %v168
    %v329 = vpop.f32.mrb[0].mxu0
    %v330 = vadd.f32 %v261, %v329
    %v331 = vpop.f32.mrb[0].mxu0
    %332 = vmatprep.mubr.f32.mxu0 0.0
    %333 = vmatmul.mubr.f32.gmra.mrb[0].mxu0 %v171
    %v334 = vpop.f32.mrb[0].mxu0
    %v335 = vadd.f32 %v261, %v334
    %v336 = vpop.f32.mrb[0].mxu0
    %337 = vdwg.mxu0
    %s338 = scalar_lea.vmem [#allocation8], 16
    %339 = vst.msk [vmem:[%s338] sm:$0xff] %vm166, %v330
    %340 = vst.msk [vmem:[%s338 + $0x8] sm:$0xff] %vm166, %v335
    %s341 = scalar_lea.vmem [#allocation7], 64
    %v342 = vld [vmem:[%s341] sm:$0xff]
    %v343 = vld [vmem:[%s341 + $0x8] sm:$0xff]
    %v344 = vld [vmem:[%s341 + $0x10] sm:$0xff]
    %v345 = vld [vmem:[%s341 + $0x18] sm:$0xff]
    %s346 = scalar_lea.vmem %s4, 2
    %v347 = vld [vmem:[%s346] sm:$0x1]
    %v349 = vlaneseq
    %v350 = vshrl.u32 %v349, 7
    %v351 = vsub.s32 0, %v350
    %v352 = vrot.slane %v347, %v351
    %354 = vmatprep.subr.mxu0 0.0
    %355 = vmatpush1.msra.mxu0 %v342
    %356 = vmatprep.subr.mxu0 0.0
    %357 = vmatpush1.msra.mxu0 %v343
    %358 = vmatprep.subr.mxu0 0.0
    %359 = vmatpush1.msra.mxu0 %v344
    %360 = vmatprep.subr.mxu0 0.0
    %361 = vmatpush1.msra.mxu0 %v345
    %362 = vmatprep.subr.mxu0 0.0
    %363 = vmatpush1.msra.mxu0 0.0
    %364 = vmatprep.subr.mxu0 0.0
    %365 = vmatpush1.msra.mxu0 0.0
    %366 = vmatprep.subr.mxu0 0.0
    %367 = vmatpush1.msra.mxu0 0.0
    %368 = vmatprep.subr.mxu0 0.0
    %369 = vmatpush1.msra.mxu0 0.0
    %370 = vmatprep.subr.mxu0 0.0
    %371 = vmatpush1.msra.mxu0 0.0
    %372 = vmatprep.subr.mxu0 0.0
    %373 = vmatpush1.msra.mxu0 0.0
    %374 = vmatprep.subr.mxu0 0.0
    %375 = vmatpush1.msra.mxu0 0.0
    %376 = vmatprep.subr.mxu0 0.0
    %377 = vmatpush1.msra.mxu0 0.0
    %378 = vmatprep.subr.mxu0 0.0
    %379 = vmatpush1.msra.mxu0 0.0
    %380 = vmatprep.subr.mxu0 0.0
    %381 = vmatpush1.msra.mxu0 0.0
    %382 = vmatprep.subr.mxu0 0.0
    %383 = vmatpush1.msra.mxu0 0.0
    %384 = vmatprep.subr.mxu0 0.0
    %385 = vmatpush1.msra.mxu0 0.0
    %386 = vmatprep.subr.mxu0 0.0
    %387 = vmatpush1.msra.mxu0 0.0
    %388 = vmatprep.subr.mxu0 0.0
    %389 = vmatpush1.msra.mxu0 0.0
    %390 = vmatprep.subr.mxu0 0.0
    %391 = vmatpush1.msra.mxu0 0.0
    %392 = vmatprep.subr.mxu0 0.0
    %393 = vmatpush1.msra.mxu0 0.0
    %394 = vmatprep.subr.mxu0 0.0
    %395 = vmatpush1.msra.mxu0 0.0
    %396 = vmatprep.subr.mxu0 0.0
    %397 = vmatpush1.msra.mxu0 0.0
    %398 = vmatprep.subr.mxu0 0.0
    %399 = vmatpush1.msra.mxu0 0.0
    %400 = vmatprep.subr.mxu0 0.0
    %401 = vmatpush1.msra.mxu0 0.0
    %402 = vmatprep.subr.mxu0 0.0
    %403 = vmatpush1.msra.mxu0 0.0
    %404 = vmatprep.subr.mxu0 0.0
    %405 = vmatpush1.msra.mxu0 0.0
    %406 = vmatprep.subr.mxu0 0.0
    %407 = vmatpush1.msra.mxu0 0.0
    %408 = vmatprep.subr.mxu0 0.0
    %409 = vmatpush1.msra.mxu0 0.0
    %410 = vmatprep.subr.mxu0 0.0
    %411 = vmatpush1.msra.mxu0 0.0
    %412 = vmatprep.subr.mxu0 0.0
    %413 = vmatpush1.msra.mxu0 0.0
    %414 = vmatprep.subr.mxu0 0.0
    %415 = vmatpush1.msra.mxu0 0.0
    %416 = vmatprep.subr.mxu0 0.0
    %417 = vmatpush1.msra.mxu0 0.0
    %418 = vmatprep.mubr.f32.mxu0 0.0
    %419 = vmatmul.mubr.f32.gmra.mrb[0].mxu0 %v168
    %v420 = vpop.f32.mrb[0].mxu0
    %v421 = vadd.f32 %v352, %v420
    %v422 = vpop.f32.mrb[0].mxu0
    %423 = vmatprep.mubr.f32.mxu0 0.0
    %424 = vmatmul.mubr.f32.gmra.mrb[0].mxu0 %v171
    %v425 = vpop.f32.mrb[0].mxu0
    %v426 = vadd.f32 %v352, %v425
    %v427 = vpop.f32.mrb[0].mxu0
    %428 = vdwg.mxu0
    %s429 = scalar_lea.vmem [#allocation8], 32
    %430 = vst.msk [vmem:[%s429] sm:$0xff] %vm166, %v421
    %431 = vst.msk [vmem:[%s429 + $0x8] sm:$0xff] %vm166, %v426
    // Predicated region
    $region34: #{tpu_custom_call.1} parent=1 // pred_check
      _
    $region35: #{tpu_custom_call.1} parent=1 // pred_check_branch
      %433 = sbr.rel (0) target = $region37
    $region36: #{tpu_custom_call.1} parent=1 // pred_region
      %s435 = ssub.s32 768, 768
      %436 = vsyncadd [#allocation4], %s435
      %s437 = sshll.u32 [#allocation8], 4
      %s438 = int_to_ptr.vmem [resolvable:$true] %s437
      %443 = dma.vmem_to_hbm [thread:$0]  %s438, 768, %s5, [#allocation4], 128, 128, 8
    $region37: #{tpu_custom_call.1} parent=1 // pred_fallthru
      _
    // Predicated region
    $region38: #{tpu_custom_call.1} parent=1 // pred_check
      _
    $region39: #{tpu_custom_call.1} parent=1 // pred_check_branch
      %445 = sbr.rel (0) target = $region41
    $region40: #{tpu_custom_call.1} parent=1 // pred_region
      %446 = dma.done [#allocation4], 768
    $region41: #{tpu_custom_call.1} parent=1 // pred_fallthru
      _
    %447 = vsyncpa [#allocation3], 1
    %448 = vsyncpa [#allocation6], 1
    %449 = vsyncpa [#allocation4], 1

</llo_original>
